<compile_context>
chip_gen: v7x
topology: tpu7x:2x2x1
jax: 0.10.0
libtpu: 0.0.40
codegen_flags: <defaults>
</compile_context>

<pallas_src>
import functools

import jax
import jax.numpy as jnp
from jax.experimental import pallas as pl
from jax.experimental.pallas import tpu as pltpu

LN_EPS = 1e-5                       # nn.LayerNorm default
WEIGHT_RESIDENT_BYTES = 20 << 20    # keep folded bf16 W fully resident below this
VMEM_CAP_BYTES = 48 << 20           # stay well under v7x's 64 MiB / TensorCore


def _round_up(x, m):
    return ((x + m - 1) // m) * m


def _pick_tm(M, *, max_tm=512, max_pad_frac=0.10):
    """Largest 8-aligned row tile <= max_tm keeping row padding under ~10%."""
    m_aligned = _round_up(M, 8)
    if m_aligned <= max_tm:
        return m_aligned
    best, best_pad = None, None
    for t in range(max_tm, 7, -8):          # descending -> first hit is largest
        m_pad = _round_up(M, t)
        pad_frac = (m_pad - M) / m_pad
        if pad_frac <= max_pad_frac:
            return t
        if best_pad is None or pad_frac < best_pad:
            best, best_pad = t, pad_frac
    return best


def _prenorm_kernel(x_ref, w_ref, b_ref, o_ref, xn_ref):
    """(tm, D) row tile of LayerNorm -> (tm, tn) tile of the Linear.

    xn_ref is a persistent VMEM scratch: the normalized row tile is computed
    only on the first column step (j == 0) and reused for all other j.
    """
    @pl.when(pl.program_id(1) == 0)
    def _():
        x = x_ref[...].astype(jnp.float32)                    # (tm, D)
        mean = jnp.mean(x, axis=-1, keepdims=True)            # (tm, 1)
        centered = x - mean
        var = jnp.mean(centered * centered, axis=-1, keepdims=True)
        xn = centered * jax.lax.rsqrt(var + LN_EPS)           # (tm, D), f32
        xn_ref[...] = xn.astype(jnp.bfloat16)

    # bf16 GEMM on the MXU, f32 accumulation, folded bias added in f32.
    out = jnp.dot(xn_ref[...], w_ref[...],
                  preferred_element_type=jnp.float32)          # (tm, tn)
    out = out + b_ref[...]
    o_ref[...] = out.astype(o_ref.dtype)


def prenorm_linear(x, gamma, beta, w, b, *, max_tm=512, stream_tn=512,
                   out_dtype=None):
    """x: (B, N, D) -> (B, N, H).  Equivalent to Linear(LayerNorm(x))."""
    B, N, D = x.shape
    H = w.shape[1]
    M = B * N
    out_dtype = x.dtype if out_dtype is None else out_dtype
    out_itemsize = jnp.dtype(out_dtype).itemsize

    # ---- tiling ------------------------------------------------------------
    tm = _pick_tm(M, max_tm=max_tm)
    M_pad = _round_up(M, tm)

    H_128 = _round_up(H, 128)
    w_resident = (D * H_128 * 2) <= WEIGHT_RESIDENT_BYTES
    if w_resident:
        tn = H_128                              # whole folded W resident in VMEM
    else:
        # Streamed column blocks; keep >=256 wide for the 2x256x256 MXUs.
        tn = max(256, min(stream_tn, H_128))
        tn = _round_up(tn, 256)
    H_pad = _round_up(H, tn)

    # ---- fold LayerNorm affine into the Linear (outside the kernel) --------
    #   (xn*gamma + beta) @ W + b == xn @ (diag(gamma) @ W) + (beta @ W + b)
    gamma_f = gamma.astype(jnp.float32)
    beta_f = beta.astype(jnp.float32)
    w_f = w.astype(jnp.float32)
    w_folded = (gamma_f[:, None] * w_f).astype(jnp.bfloat16)        # (D, H)
    b_folded = (beta_f @ w_f + b.astype(jnp.float32)).reshape(1, H)

    # ---- pad rows / hidden columns to the tile grid ------------------------
    x2 = x.reshape(M, D)
    if M_pad != M:
        x2 = jnp.pad(x2, ((0, M_pad - M), (0, 0)))
    if H_pad != H:
        w_folded = jnp.pad(w_folded, ((0, 0), (0, H_pad - H)))
        b_folded = jnp.pad(b_folded, ((0, 0), (0, H_pad - H)))

    grid_m = M_pad // tm
    grid_n = H_pad // tn

    # ---- VMEM budget (double-buffered tiles + scratch + LN temporaries) ----
    w_tile_bytes = D * tn * 2
    per_step_bytes = (
        2 * tm * D * x2.dtype.itemsize            # x row tile (double-buffered)
        + (1 if w_resident else 2) * w_tile_bytes  # W (resident or streamed x2)
        + 2 * tm * tn * out_itemsize               # out tile (double-buffered)
        + 2 * tn * 4                               # bias block
        + tm * D * 2                               # xn bf16 scratch
        + 3 * tm * D * 4                           # LN f32 temporaries headroom
    )
    vmem_limit = int(min(max(per_step_bytes + (8 << 20), 32 << 20),
                         VMEM_CAP_BYTES))

    cost = pl.CostEstimate(
        flops=2 * M_pad * H_pad * D,
        transcendentals=M_pad,                     # one rsqrt per row
        bytes_accessed=(M_pad * D * x2.dtype.itemsize
                        + D * H_pad * 2
                        + H_pad * 4
                        + M_pad * H_pad * out_itemsize),
    )

    out2 = pl.pallas_call(
        _prenorm_kernel,
        out_shape=jax.ShapeDtypeStruct((M_pad, H_pad), out_dtype),
        grid_spec=pltpu.PrefetchScalarGridSpec(
            num_scalar_prefetch=0,
            grid=(grid_m, grid_n),
            in_specs=[
                # x row tile: constant over j, so the resident tile is reused.
                pl.BlockSpec((tm, D), lambda i, j: (i, 0)),
                # Folded weight: resident (single block) or streamed per column.
                pl.BlockSpec((D, tn), lambda i, j: (0, j)),
                # Folded bias column block.
                pl.BlockSpec((1, tn), lambda i, j: (0, j)),
            ],
            out_specs=pl.BlockSpec((tm, tn), lambda i, j: (i, j)),
            # Persistent bf16 xn cache, filled at j == 0, reused for j > 0.
            scratch_shapes=[pltpu.VMEM((tm, D), jnp.bfloat16)],
        ),
        compiler_params=pltpu.CompilerParams(
            # j must be sequential per core for the j==0 LN-cache guard; i stays
            # parallel so megacore (v7x) still shards row tiles across TCs.
            dimension_semantics=("parallel", "arbitrary"),
            vmem_limit_bytes=vmem_limit,
        ),
        cost_estimate=cost,
    )(x2, w_folded, b_folded)

    return out2[:M, :H].reshape(B, N, H)


def reference(x, gamma, beta, w, b):
    """Pure-JAX f32 reference matching torch PreNorm(dim, Linear(dim, H))."""
    xf = x.astype(jnp.float32)
    mean = jnp.mean(xf, axis=-1, keepdims=True)
    var = jnp.mean((xf - mean) ** 2, axis=-1, keepdims=True)
    y = (xf - mean) * jax.lax.rsqrt(var + LN_EPS) * gamma + beta
    return (y @ w.astype(jnp.float32) + b).astype(x.dtype)


if __name__ == "__main__":
    key = jax.random.PRNGKey(0)
    # Small but lane-dense shapes: (B, N, D) -> (B, N, H).
    B, N, D, H = 2, 8, 128, 256

    k_x, k_g, k_b, k_w, k_bias = jax.random.split(key, 5)
    x = jax.random.normal(k_x, (B, N, D), dtype=jnp.float32)

    # Deterministic "module" parameters (LayerNorm affine + Linear fn).
    gamma = jnp.ones((D,), jnp.float32) + 0.01 * jax.random.normal(k_g, (D,))
    beta = 0.01 * jax.random.normal(k_b, (D,))
    w = 0.1 * jax.random.normal(k_w, (D, H), dtype=jnp.float32)
    b = 0.1 * jax.random.normal(k_bias, (H,), dtype=jnp.float32)

    fwd = jax.jit(prenorm_linear)
    out = fwd(x, gamma, beta, w, b)
    out = jax.block_until_ready(out)

    ref = reference(x, gamma, beta, w, b)
    assert out.shape == (B, N, H)
    # bf16 matmul operands -> compare against the f32 reference with a
    # tolerance covering bf16 rounding of x_hat and the folded weight.
    assert jnp.allclose(out, ref, atol=2e-2, rtol=2e-2), "mismatch vs reference"

    print("KERNEL_OK")
</pallas_src>

<mosaic_0001>
module attributes {stable_mosaic.version = 11 : i64} {
  func.func @_prenorm_kernel(%arg0: i32, %arg1: i32, %arg2: memref<16x128xf32, #tpu.memory_space<vmem>>, %arg3: memref<128x256xbf16, #tpu.memory_space<vmem>>, %arg4: memref<1x256xf32, #tpu.memory_space<vmem>>, %arg5: memref<16x256xf32, #tpu.memory_space<vmem>>, %arg6: memref<16x128xbf16, #tpu.memory_space<vmem>>) attributes {dimension_semantics = [#tpu.dimension_semantics<parallel>, #tpu.dimension_semantics<arbitrary>], iteration_bounds = array<i64: 1, 1>, scalar_prefetch = 0 : i64, scratch_operands = 1 : i64, tpu.core_type = #tpu.core_type<tc>, window_params = [{transform_indices = @transform_0, window_bounds = array<i64: 16, 128>}, {transform_indices = @transform_1, window_bounds = array<i64: 128, 256>}, {transform_indices = @transform_2, window_bounds = array<i64: 1, 256>}, {transform_indices = @transform_3, window_bounds = array<i64: 16, 256>}]} {
    %c0_i32 = arith.constant 0 : i32
    %0 = arith.cmpi eq, %arg1, %c0_i32 : i32
    %1 = arith.extui %0 : i1 to i32
    %c0_i32_0 = arith.constant 0 : i32
    %2 = arith.cmpi ne, %1, %c0_i32_0 : i32
    scf.if %2 {
      %c0_8 = arith.constant 0 : index
      %c0_9 = arith.constant 0 : index
      %10 = vector.load %arg2[%c0_8, %c0_9] : memref<16x128xf32, #tpu.memory_space<vmem>>, vector<16x128xf32>
      %cst_10 = arith.constant dense<0.000000e+00> : vector<16xf32>
      %11 = vector.multi_reduction <add>, %10, %cst_10 [1] : vector<16x128xf32> to vector<16xf32>
      %12 = vector.shape_cast %11 : vector<16xf32> to vector<16x1xf32>
      %cst_11 = arith.constant 1.280000e+02 : f32
      %13 = vector.broadcast %cst_11 : f32 to vector<16x1xf32>
      %14 = arith.divf %12, %13 : vector<16x1xf32>
      %15 = vector.broadcast %14 : vector<16x1xf32> to vector<16x128xf32>
      %16 = arith.subf %10, %15 : vector<16x128xf32>
      %17 = arith.mulf %16, %16 : vector<16x128xf32>
      %cst_12 = arith.constant dense<0.000000e+00> : vector<16xf32>
      %18 = vector.multi_reduction <add>, %17, %cst_12 [1] : vector<16x128xf32> to vector<16xf32>
      %19 = vector.shape_cast %18 : vector<16xf32> to vector<16x1xf32>
      %cst_13 = arith.constant 1.280000e+02 : f32
      %20 = vector.broadcast %cst_13 : f32 to vector<16x1xf32>
      %21 = arith.divf %19, %20 : vector<16x1xf32>
      %cst_14 = arith.constant 9.99999974E-6 : f32
      %22 = vector.broadcast %cst_14 : f32 to vector<16x1xf32>
      %23 = arith.addf %21, %22 : vector<16x1xf32>
      %24 = math.rsqrt %23 : vector<16x1xf32>
      %25 = vector.broadcast %24 : vector<16x1xf32> to vector<16x128xf32>
      %26 = arith.mulf %16, %25 : vector<16x128xf32>
      %27 = arith.truncf %26 : vector<16x128xf32> to vector<16x128xbf16>
      %c0_15 = arith.constant 0 : index
      %c0_16 = arith.constant 0 : index
      %28 = vector.load %arg6[%c0_15, %c0_16] : memref<16x128xbf16, #tpu.memory_space<vmem>>, vector<16x128xbf16>
      tpu.vector_store %arg6[%c0_15, %c0_16], %27 {strides = array<i32>} : memref<16x128xbf16, #tpu.memory_space<vmem>>, vector<16x128xbf16>,
    } else {
    }
    %c0 = arith.constant 0 : index
    %c0_1 = arith.constant 0 : index
    %3 = vector.load %arg6[%c0, %c0_1] : memref<16x128xbf16, #tpu.memory_space<vmem>>, vector<16x128xbf16>
    %c0_2 = arith.constant 0 : index
    %c0_3 = arith.constant 0 : index
    %4 = vector.load %arg3[%c0_2, %c0_3] : memref<128x256xbf16, #tpu.memory_space<vmem>>, vector<128x256xbf16>
    %cst = arith.constant dense<0.000000e+00> : vector<16x256xf32>
    %5 = tpu.matmul %3, %4, %cst {dimension_numbers = #tpu.dot_dimension_numbers<[1], [0], [0], [1], [0, 0, 1, 1], [], []>} : vector<16x128xbf16>, vector<128x256xbf16>, vector<16x256xf32> -> vector<16x256xf32>
    %c0_4 = arith.constant 0 : index
    %c0_5 = arith.constant 0 : index
    %6 = vector.load %arg4[%c0_4, %c0_5] : memref<1x256xf32, #tpu.memory_space<vmem>>, vector<1x256xf32>
    %7 = vector.broadcast %6 : vector<1x256xf32> to vector<16x256xf32>
    %8 = arith.addf %5, %7 : vector<16x256xf32>
    %c0_6 = arith.constant 0 : index
    %c0_7 = arith.constant 0 : index
    %9 = vector.load %arg5[%c0_6, %c0_7] : memref<16x256xf32, #tpu.memory_space<vmem>>, vector<16x256xf32>
    tpu.vector_store %arg5[%c0_6, %c0_7], %8 {strides = array<i32>} : memref<16x256xf32, #tpu.memory_space<vmem>>, vector<16x256xf32>,
    return
  }
  func.func @transform_0(%arg0: i32, %arg1: i32) -> (i32, i32) {
    %c0_i32 = arith.constant 0 : i32
    %c0_i32_0 = arith.constant 0 : i32
    return %arg0, %c0_i32 : i32, i32
  }
  func.func @transform_1(%arg0: i32, %arg1: i32) -> (i32, i32) {
    %c0_i32 = arith.constant 0 : i32
    %c0_i32_0 = arith.constant 0 : i32
    return %c0_i32, %arg1 : i32, i32
  }
  func.func @transform_2(%arg0: i32, %arg1: i32) -> (i32, i32) {
    %c0_i32 = arith.constant 0 : i32
    %c0_i32_0 = arith.constant 0 : i32
    return %c0_i32, %arg1 : i32, i32
  }
  func.func @transform_3(%arg0: i32, %arg1: i32) -> (i32, i32) {
    %c0_i32 = arith.constant 0 : i32
    return %arg0, %arg1 : i32, i32
  }
}

</mosaic_0001>

<llo_original>
// kernel: prenorm_linear.1
$region0: #{prenorm_linear.1}
  #allocation0 [shape = 'u32[]', space=smem, size = 0x4, offset = 0x4, fixed_abs, tag = 'smem constant byte address 0x4 - core index']
  #allocation1 [shape = 'u32[144,128]{1,0:T(1,128)}', space=vmem, size = 0x12000, scoped, tag = 'internal scratch']
  #allocation2 [shape = 'bf16[16,128]{1,0:T(16,128)(2,1)}', space=vmem, size = 0x1000, scoped, tag = 'scratch operand']
  %s0 = inlined_call_operand.vmem [shape: f32[16,128], index: 0, kind: input, shape index: {}]
  %s1 = inlined_call_operand.vmem [shape: bf16[128,256], index: 1, kind: input, shape index: {}]
  %s2 = inlined_call_operand.vmem [shape: f32[1,256], index: 2, kind: input, shape index: {}]
  %s3 = inlined_call_operand.hbm [shape: f32[16,256], index: 3, kind: output, shape index: {}]
  %s4 = sld [smem:[#allocation0]]
  $region26: #{prenorm_linear.1} parent=0
    _
  %s6 = ssub.s32 1, %s4
  %s7 = scalar_select 0, %s6, %s4
  $region1: #{prenorm_linear.1} parent=0
    #allocation3 [shape = 'u8[16384]{0}', space=vmem, size = 0x4000, scoped, tag = 'output window, operand 0, single buffered']
    #allocation4 [shape = 's32[1]{0}', space=sflag, size = 0x4, scoped, tag = 'scoped memory for prenorm_linear.1']
    %8 = vsyncpa [#allocation4], 0
    // Predicated region
    $region2: #{prenorm_linear.1} parent=1 // pred_check
      _
    $region3: #{prenorm_linear.1} parent=1 // pred_check_branch
      %10 = sbr.rel (0) target = $region5
    $region4: #{prenorm_linear.1} parent=1 // pred_region
      _
    $region5: #{prenorm_linear.1} parent=1 // pred_fallthru
      _
    // Predicated region
    $region6: #{prenorm_linear.1} parent=1 // pred_check
      _
    $region7: #{prenorm_linear.1} parent=1 // pred_check_branch
      %12 = sbr.rel (0) target = $region9
    $region8: #{prenorm_linear.1} parent=1 // pred_region
      _
    $region9: #{prenorm_linear.1} parent=1 // pred_fallthru
      _
    // Predicated region
    $region10: #{prenorm_linear.1} parent=1 // pred_check
      _
    $region11: #{prenorm_linear.1} parent=1 // pred_check_branch
      %14 = sbr.rel (0) target = $region13
    $region12: #{prenorm_linear.1} parent=1 // pred_region
      _
    $region13: #{prenorm_linear.1} parent=1 // pred_fallthru
      _
    %p16 = scmp.eq.s32.totalorder 0, 0
    // Predicated region
    $region14: #{prenorm_linear.1} parent=1 // pred_check
      %p17 = pneg %p16
    $region15: #{prenorm_linear.1} parent=1 // pred_check_branch
      %19 = sbr.rel (%p17) target = $region17
    $region16: #{prenorm_linear.1} parent=1 // pred_region
      %v20 = vld [vmem:[%s0] sm:$0xff]
      %v21 = vld [vmem:[%s0 + $0x8] sm:$0xff]
      %22 = vadd.xlane.f32.xlu0 %v20
      %v23 = vpop.xlane.xlu0 %22
      %24 = vadd.xlane.f32.xlu0 %v21
      %v25 = vpop.xlane.xlu0 %24
      %v26 = vrcp.pop 128.0
      %v27 = vmul.f32 %v23, %v26
      %v28 = vmul.f32 %v25, %v26
      %v29 = vsub.f32 %v20, %v27
      %v30 = vsub.f32 %v21, %v28
      %v31 = vmul.f32 %v29, %v29
      %v32 = vmul.f32 %v30, %v30
      %33 = vadd.xlane.f32.xlu0 %v31
      %v34 = vpop.xlane.xlu0 %33
      %35 = vadd.xlane.f32.xlu0 %v32
      %v36 = vpop.xlane.xlu0 %35
      %v37 = vmul.f32 %v34, %v26
      %v38 = vmul.f32 %v36, %v26
      %v39 = vadd.f32 %v37, 1e-05
      %v40 = vadd.f32 %v38, 1e-05
      %v41 = vrsqrt.pop %v39
      %v42 = vrsqrt.pop %v40
      %v43 = vmul.f32 %v29, %v41
      %v44 = vmul.f32 %v30, %v42
      %v45 = vpack.c.bf16 %v44, %v43
      %46 = vst [vmem:[#allocation2] sm:$0xff] %v45
    $region17: #{prenorm_linear.1} parent=1 // pred_fallthru
      _
    %v47 = vld [vmem:[#allocation2] sm:$0xff]
    %v48 = vld [vmem:[%s1] sm:$0xff]
    %v49 = vld [vmem:[%s1 + $0x8] sm:$0xff]
    %v50 = vld [vmem:[%s1 + $0x10] sm:$0xff]
    %v51 = vld [vmem:[%s1 + $0x18] sm:$0xff]
    %v52 = vld [vmem:[%s1 + $0x20] sm:$0xff]
    %v53 = vld [vmem:[%s1 + $0x28] sm:$0xff]
    %v54 = vld [vmem:[%s1 + $0x30] sm:$0xff]
    %v55 = vld [vmem:[%s1 + $0x38] sm:$0xff]
    %v56 = vld [vmem:[%s1 + $0x40] sm:$0xff]
    %v57 = vld [vmem:[%s1 + $0x48] sm:$0xff]
    %v58 = vld [vmem:[%s1 + $0x50] sm:$0xff]
    %v59 = vld [vmem:[%s1 + $0x58] sm:$0xff]
    %v60 = vld [vmem:[%s1 + $0x60] sm:$0xff]
    %v61 = vld [vmem:[%s1 + $0x68] sm:$0xff]
    %v62 = vld [vmem:[%s1 + $0x70] sm:$0xff]
    %v63 = vld [vmem:[%s1 + $0x78] sm:$0xff]
    %v64 = vld [vmem:[%s2] sm:$0x3]
    %v66 = vlaneseq
    %v67 = vshrl.u32 %v66, 7
    %v68 = vsub.s32 0, %v67
    %v69 = vrot.slane %v64, %v68
    %v70 = vlaneseq
    %v71 = vshrl.u32 %v70, 7
    %v72 = vsub.s32 1, %v71
    %v73 = vrot.slane %v64, %v72
    %v92 = vunpack.c.l.b16 %v48
    %v93 = vunpack.c.h.b16 %v48
    %v94 = vunpack.c.l.b16 %v49
    %v95 = vunpack.c.h.b16 %v49
    %v96 = vunpack.c.l.b16 %v50
    %v97 = vunpack.c.h.b16 %v50
    %v98 = vunpack.c.l.b16 %v51
    %v99 = vunpack.c.h.b16 %v51
    %v100 = vunpack.c.l.b16 %v52
    %v101 = vunpack.c.h.b16 %v52
    %v102 = vunpack.c.l.b16 %v53
    %v103 = vunpack.c.h.b16 %v53
    %v104 = vunpack.c.l.b16 %v54
    %v105 = vunpack.c.h.b16 %v54
    %v106 = vunpack.c.l.b16 %v55
    %v107 = vunpack.c.h.b16 %v55
    %v108 = vunpack.c.l.b16 %v56
    %v109 = vunpack.c.h.b16 %v56
    %v110 = vunpack.c.l.b16 %v57
    %v111 = vunpack.c.h.b16 %v57
    %v112 = vunpack.c.l.b16 %v58
    %v113 = vunpack.c.h.b16 %v58
    %v114 = vunpack.c.l.b16 %v59
    %v115 = vunpack.c.h.b16 %v59
    %v116 = vunpack.c.l.b16 %v60
    %v117 = vunpack.c.h.b16 %v60
    %v118 = vunpack.c.l.b16 %v61
    %v119 = vunpack.c.h.b16 %v61
    %v120 = vunpack.c.l.b16 %v62
    %v121 = vunpack.c.h.b16 %v62
    %v122 = vunpack.c.l.b16 %v63
    %v123 = vunpack.c.h.b16 %v63
    %v124 = vpack.c.b16 %v94, %v92
    %v125 = vpack.c.b16 %v95, %v93
    %v126 = vpack.c.b16 %v98, %v96
    %v127 = vpack.c.b16 %v99, %v97
    %v128 = vpack.c.b16 %v102, %v100
    %v129 = vpack.c.b16 %v103, %v101
    %v130 = vpack.c.b16 %v106, %v104
    %v131 = vpack.c.b16 %v107, %v105
    %v132 = vpack.c.b16 %v110, %v108
    %v133 = vpack.c.b16 %v111, %v109
    %v134 = vpack.c.b16 %v114, %v112
    %v135 = vpack.c.b16 %v115, %v113
    %v136 = vpack.c.b16 %v118, %v116
    %v137 = vpack.c.b16 %v119, %v117
    %v138 = vpack.c.b16 %v122, %v120
    %v139 = vpack.c.b16 %v123, %v121
    %156 = vmatprep.subr.bf16.mxu0 %v125
    %157 = vmatpush1.bf16.msra.mxu0 %v124
    %158 = vmatprep.subr.bf16.mxu0 %v127
    %159 = vmatpush1.bf16.msra.mxu0 %v126
    %160 = vmatprep.subr.bf16.mxu0 %v129
    %161 = vmatpush1.bf16.msra.mxu0 %v128
    %162 = vmatprep.subr.bf16.mxu0 %v131
    %163 = vmatpush1.bf16.msra.mxu0 %v130
    %164 = vmatprep.subr.bf16.mxu0 %v133
    %165 = vmatpush1.bf16.msra.mxu0 %v132
    %166 = vmatprep.subr.bf16.mxu0 %v135
    %167 = vmatpush1.bf16.msra.mxu0 %v134
    %168 = vmatprep.subr.bf16.mxu0 %v137
    %169 = vmatpush1.bf16.msra.mxu0 %v136
    %170 = vmatprep.subr.bf16.mxu0 %v139
    %171 = vmatpush1.bf16.msra.mxu0 %v138
    %172 = vmatprep.subr.bf16.mxu0 0
    %173 = vmatpush1.bf16.msra.mxu0 0
    %174 = vmatprep.subr.bf16.mxu0 0
    %175 = vmatpush1.bf16.msra.mxu0 0
    %176 = vmatprep.subr.bf16.mxu0 0
    %177 = vmatpush1.bf16.msra.mxu0 0
    %178 = vmatprep.subr.bf16.mxu0 0
    %179 = vmatpush1.bf16.msra.mxu0 0
    %180 = vmatprep.subr.bf16.mxu0 0
    %181 = vmatpush1.bf16.msra.mxu0 0
    %182 = vmatprep.subr.bf16.mxu0 0
    %183 = vmatpush1.bf16.msra.mxu0 0
    %184 = vmatprep.subr.bf16.mxu0 0
    %185 = vmatpush1.bf16.msra.mxu0 0
    %186 = vmatprep.subr.bf16.mxu0 0
    %187 = vmatpush1.bf16.msra.mxu0 0
    %188 = vmatprep.mubr.bf16.mxu0 0
    %189 = vmatmul.mubr.bf16.gmra.mrb[0].mxu0 %v47
    %v190 = vpop.f32.mrb[0].mxu0
    %v191 = vadd.f32 %v69, %v190
    %v192 = vpop.f32.mrb[0].mxu0
    %v193 = vadd.f32 %v73, %v192
    %v194 = vpop.f32.mrb[0].mxu0
    %v195 = vadd.f32 %v69, %v194
    %v196 = vpop.f32.mrb[0].mxu0
    %v197 = vadd.f32 %v73, %v196
    %198 = vdwg.mxu0
    %199 = vst [vmem:[#allocation3] sm:$0xff] %v191
    %200 = vst [vmem:[#allocation3 + $0x8] sm:$0xff] %v193
    %201 = vst [vmem:[#allocation3 + $0x10] sm:$0xff] %v195
    %202 = vst [vmem:[#allocation3 + $0x18] sm:$0xff] %v197
    // Predicated region
    $region18: #{prenorm_linear.1} parent=1 // pred_check
      _
    $region19: #{prenorm_linear.1} parent=1 // pred_check_branch
      %204 = sbr.rel (0) target = $region21
    $region20: #{prenorm_linear.1} parent=1 // pred_region
      %s206 = ssub.s32 512, 512
      %207 = vsyncadd [#allocation4], %s206
      %s208 = sshll.u32 [#allocation3], 4
      %s209 = int_to_ptr.vmem [resolvable:$true] %s208
      %214 = dma.vmem_to_hbm [thread:$0]  %s209, 512, %s3, [#allocation4], 256, 256, 16
    $region21: #{prenorm_linear.1} parent=1 // pred_fallthru
      _
    // Predicated region
    $region22: #{prenorm_linear.1} parent=1 // pred_check
      _
    $region23: #{prenorm_linear.1} parent=1 // pred_check_branch
      %216 = sbr.rel (0) target = $region25
    $region24: #{prenorm_linear.1} parent=1 // pred_region
      %217 = dma.done [#allocation4], 512
    $region25: #{prenorm_linear.1} parent=1 // pred_fallthru
      _
    %218 = vsyncpa [#allocation4], 1

</llo_original>
